<compile_context>
chip_gen: v6e
topology: v6e:2x2x1
jax: 0.10.0
libtpu: 0.0.40
codegen_flags: <defaults>
</compile_context>

<pallas_src>
import functools

import jax
import jax.numpy as jnp
from jax.experimental import pallas as pl
from jax.experimental.pallas import tpu as pltpu


def _sge_kernel(x_ref, w_ref, b_ref, o_ref, *, gpb, num_gb):
    # x_ref / o_ref : (1, gpb, cpg, hw) tile of the input / output
    # w_ref / b_ref : (groups, 1) f32, whole (tiny) array resident in VMEM
    x = x_ref[0].astype(jnp.float32)                        # (gpb, cpg, hw)
    hw = x.shape[-1]
    inv_hw = jnp.float32(1.0 / hw)

    # adaptive avg pool over spatial dims, per channel of each group.
    ch_mean = jnp.sum(x, axis=-1, keepdims=True) * inv_hw   # (gpb, cpg, 1)

    # channel-weighted sum per group -> importance map (sublane-packed 2-D).
    xn = jnp.sum(x * ch_mean, axis=1)                       # (gpb, hw)

    # normalize over spatial positions (torch .std() is unbiased -> /(n-1)).
    mu = jnp.sum(xn, axis=-1, keepdims=True) * inv_hw       # (gpb, 1)
    tc = xn - mu
    var = jnp.sum(tc * tc, axis=-1, keepdims=True) * jnp.float32(1.0 / (hw - 1))
    inv_std = pl.reciprocal(jnp.sqrt(var) + jnp.float32(1e-5), approx=True)
    t = tc * inv_std                                        # (gpb, hw)

    # per-group affine + sigmoid gate.
    if num_gb == 1:
        w = w_ref[...]                                      # (gpb, 1)
        b = b_ref[...]
    else:
        g0 = pl.multiple_of(pl.program_id(1) * gpb, gpb)
        w = w_ref[pl.ds(g0, gpb), :]
        b = b_ref[pl.ds(g0, gpb), :]
    gate = jax.nn.sigmoid(t * w + b)                        # (gpb, hw)

    o_ref[0] = (x * gate[:, None, :]).astype(o_ref.dtype)


def sge_forward(x, weight, bias, groups, *, max_block_bytes=2 * 1024 * 1024):
    """x: (B, C, H, W) NCHW (any float dtype); weight/bias: (1, groups, 1, 1)."""
    b, c, h, w = x.shape
    assert c % groups == 0
    cpg = c // groups
    hw = h * w
    assert hw > 1, "SGE needs at least 2 spatial positions (unbiased std)"

    xg = x.reshape(b, groups, cpg, hw)                      # free reshape
    wf = weight.reshape(groups, 1).astype(jnp.float32)
    bf = bias.reshape(groups, 1).astype(jnp.float32)

    # pick groups-per-block: biggest divisor of `groups` whose f32-equivalent
    # x tile fits the budget (keeps double-buffered I/O + temporaries in VMEM).
    gpb = 1
    for d in range(groups, 0, -1):
        if groups % d == 0 and d * cpg * hw * 4 <= max_block_bytes:
            gpb = d
            break
    num_gb = groups // gpb

    kernel = functools.partial(_sge_kernel, gpb=gpb, num_gb=num_gb)

    out = pl.pallas_call(
        kernel,
        out_shape=jax.ShapeDtypeStruct((b, groups, cpg, hw), x.dtype),
        grid=(b, num_gb),
        in_specs=[
            pl.BlockSpec((1, gpb, cpg, hw), lambda bi, gi: (bi, gi, 0, 0)),
            pl.BlockSpec((groups, 1), lambda bi, gi: (0, 0)),
            pl.BlockSpec((groups, 1), lambda bi, gi: (0, 0)),
        ],
        out_specs=pl.BlockSpec(
            (1, gpb, cpg, hw), lambda bi, gi: (bi, gi, 0, 0)
        ),
        compiler_params=pltpu.CompilerParams(
            dimension_semantics=("parallel", "parallel"),
            vmem_limit_bytes=32 * 1024 * 1024,
        ),
    )(xg, wf, bf)

    return out.reshape(b, c, h, w)


def sge_reference(x, weight, bias, groups):
    """Pure-JAX reference mirroring the PyTorch forward exactly."""
    b, c, h, w = x.shape
    xg = x.reshape(b * groups, c // groups, h, w).astype(jnp.float32)
    mean = xg.mean(axis=(2, 3), keepdims=True)
    xn = (xg * mean).sum(axis=1, keepdims=True)
    t = xn.reshape(b * groups, -1)
    t = t - t.mean(axis=1, keepdims=True)
    std = jnp.std(t, axis=1, keepdims=True, ddof=1) + 1e-5
    t = t / std
    t = t.reshape(b, groups, h, w)
    t = t * weight + bias
    t = t.reshape(b * groups, 1, h, w)
    xg = xg * jax.nn.sigmoid(t)
    return xg.reshape(b, c, h, w)


if __name__ == "__main__":
    key = jax.random.PRNGKey(0)
    k1, k2, k3, k4 = jax.random.split(key, 4)

    B, C, H, W = 2, 32, 16, 16
    GROUPS = 8  # C must be divisible by groups

    x = jax.random.normal(k1, (B, C, H, W), dtype=jnp.float32)

    # Deterministic parameter init exactly as in SGE.__init__:
    weight = jnp.zeros((1, GROUPS, 1, 1), dtype=jnp.float32)
    bias = jnp.ones((1, GROUPS, 1, 1), dtype=jnp.float32)

    # 1) main check: default init, H*W a multiple of 128 (lane-dense stores).
    out = jax.block_until_ready(sge_forward(x, weight, bias, GROUPS))
    ref = sge_reference(x, weight, bias, GROUPS)
    assert out.shape == (B, C, H, W) and out.dtype == x.dtype
    assert jnp.allclose(out, ref, atol=1e-4, rtol=1e-4)

    # 2) non-multiple-of-128 spatial size (full-extent last block dim, no pad)
    #    with non-trivial affine params (loose tol: approx reciprocal on EUP).
    x2 = jax.random.normal(k2, (B, C, 12, 12), dtype=jnp.float32)
    w2 = 0.5 * jax.random.normal(k3, (1, GROUPS, 1, 1), dtype=jnp.float32)
    b2 = 1.0 + 0.2 * jax.random.normal(k4, (1, GROUPS, 1, 1), dtype=jnp.float32)
    out2 = jax.block_until_ready(sge_forward(x2, w2, b2, GROUPS))
    ref2 = sge_reference(x2, w2, b2, GROUPS)
    assert jnp.allclose(out2, ref2, atol=1e-2, rtol=1e-2)

    # 3) force a group split (num_group_blocks > 1) via a tiny VMEM budget.
    out3 = jax.block_until_ready(
        sge_forward(x, weight, bias, GROUPS, max_block_bytes=16 * 1024)
    )
    assert jnp.allclose(out3, ref, atol=1e-4, rtol=1e-4)

    # 4) native bf16 I/O (compute stays f32 inside the kernel).
    xb = x.astype(jnp.bfloat16)
    outb = jax.block_until_ready(sge_forward(xb, weight, bias, GROUPS))
    refb = sge_reference(xb.astype(jnp.float32), weight, bias, GROUPS)
    assert outb.dtype == jnp.bfloat16
    assert jnp.allclose(outb.astype(jnp.float32), refb, atol=3e-2, rtol=3e-2)

    print("KERNEL_OK")
</pallas_src>

<mosaic_0001>
module attributes {stable_mosaic.version = 11 : i64} {
  func.func @_sge_kernel(%arg0: i32, %arg1: i32, %arg2: memref<1x8x4x256xf32, #tpu.memory_space<vmem>>, %arg3: memref<8x1xf32, #tpu.memory_space<vmem>>, %arg4: memref<8x1xf32, #tpu.memory_space<vmem>>, %arg5: memref<1x8x4x256xf32, #tpu.memory_space<vmem>>) attributes {dimension_semantics = [#tpu.dimension_semantics<parallel>, #tpu.dimension_semantics<parallel>], iteration_bounds = array<i64: 2, 1>, scalar_prefetch = 0 : i64, scratch_operands = 0 : i64, tpu.core_type = #tpu.core_type<tc>, window_params = [{transform_indices = @transform_0, window_bounds = array<i64: 1, 8, 4, 256>}, {pipeline_mode = #tpu.pipeline_mode<synchronous>, transform_indices = @transform_1, window_bounds = array<i64: 8, 1>}, {pipeline_mode = #tpu.pipeline_mode<synchronous>, transform_indices = @transform_2, window_bounds = array<i64: 8, 1>}, {transform_indices = @transform_3, window_bounds = array<i64: 1, 8, 4, 256>}]} {
    %c0 = arith.constant 0 : index
    %c0_0 = arith.constant 0 : index
    %c0_1 = arith.constant 0 : index
    %c0_2 = arith.constant 0 : index
    %0 = vector.load %arg2[%c0, %c0_0, %c0_1, %c0_2] : memref<1x8x4x256xf32, #tpu.memory_space<vmem>>, vector<1x8x4x256xf32>
    %1 = vector.shape_cast %0 : vector<1x8x4x256xf32> to vector<8x4x256xf32>
    %cst = arith.constant dense<0.000000e+00> : vector<8x4xf32>
    %2 = vector.multi_reduction <add>, %1, %cst [2] : vector<8x4x256xf32> to vector<8x4xf32>
    %3 = vector.shape_cast %2 : vector<8x4xf32> to vector<8x4x1xf32>
    %cst_3 = arith.constant 3.906250e-03 : f32
    %4 = vector.broadcast %cst_3 : f32 to vector<8x4x1xf32>
    %5 = arith.mulf %3, %4 : vector<8x4x1xf32>
    %6 = vector.broadcast %5 : vector<8x4x1xf32> to vector<8x4x256xf32>
    %7 = arith.mulf %1, %6 : vector<8x4x256xf32>
    %cst_4 = arith.constant dense<0.000000e+00> : vector<8x256xf32>
    %8 = vector.multi_reduction <add>, %7, %cst_4 [1] : vector<8x4x256xf32> to vector<8x256xf32>
    %cst_5 = arith.constant dense<0.000000e+00> : vector<8xf32>
    %9 = vector.multi_reduction <add>, %8, %cst_5 [1] : vector<8x256xf32> to vector<8xf32>
    %10 = vector.shape_cast %9 : vector<8xf32> to vector<8x1xf32>
    %cst_6 = arith.constant 3.906250e-03 : f32
    %11 = vector.broadcast %cst_6 : f32 to vector<8x1xf32>
    %12 = arith.mulf %10, %11 : vector<8x1xf32>
    %13 = vector.broadcast %12 : vector<8x1xf32> to vector<8x256xf32>
    %14 = arith.subf %8, %13 : vector<8x256xf32>
    %15 = arith.mulf %14, %14 : vector<8x256xf32>
    %cst_7 = arith.constant dense<0.000000e+00> : vector<8xf32>
    %16 = vector.multi_reduction <add>, %15, %cst_7 [1] : vector<8x256xf32> to vector<8xf32>
    %17 = vector.shape_cast %16 : vector<8xf32> to vector<8x1xf32>
    %cst_8 = arith.constant 0.00392156886 : f32
    %18 = vector.broadcast %cst_8 : f32 to vector<8x1xf32>
    %19 = arith.mulf %17, %18 : vector<8x1xf32>
    %20 = math.sqrt %19 : vector<8x1xf32>
    %cst_9 = arith.constant 9.99999974E-6 : f32
    %21 = vector.broadcast %cst_9 : f32 to vector<8x1xf32>
    %22 = arith.addf %20, %21 : vector<8x1xf32>
    %23 = tpu.reciprocal %22 {approx = true} : vector<8x1xf32> -> vector<8x1xf32>
    %24 = vector.broadcast %23 : vector<8x1xf32> to vector<8x256xf32>
    %25 = arith.mulf %14, %24 : vector<8x256xf32>
    %c0_10 = arith.constant 0 : index
    %c0_11 = arith.constant 0 : index
    %26 = vector.load %arg3[%c0_10, %c0_11] : memref<8x1xf32, #tpu.memory_space<vmem>>, vector<8x1xf32>
    %c0_12 = arith.constant 0 : index
    %c0_13 = arith.constant 0 : index
    %27 = vector.load %arg4[%c0_12, %c0_13] : memref<8x1xf32, #tpu.memory_space<vmem>>, vector<8x1xf32>
    %28 = vector.broadcast %26 : vector<8x1xf32> to vector<8x256xf32>
    %29 = arith.mulf %25, %28 : vector<8x256xf32>
    %30 = vector.broadcast %27 : vector<8x1xf32> to vector<8x256xf32>
    %31 = arith.addf %29, %30 : vector<8x256xf32>
    %32 = arith.negf %31 : vector<8x256xf32>
    %33 = math.exp %32 : vector<8x256xf32>
    %cst_14 = arith.constant 1.000000e+00 : f32
    %34 = vector.broadcast %cst_14 : f32 to vector<8x256xf32>
    %35 = arith.addf %34, %33 : vector<8x256xf32>
    %36 = arith.divf %34, %35 : vector<8x256xf32>
    %37 = vector.shape_cast %36 : vector<8x256xf32> to vector<8x1x256xf32>
    %38 = vector.broadcast %37 : vector<8x1x256xf32> to vector<8x4x256xf32>
    %39 = arith.mulf %1, %38 : vector<8x4x256xf32>
    %c0_15 = arith.constant 0 : index
    %c0_16 = arith.constant 0 : index
    %c0_17 = arith.constant 0 : index
    %c0_18 = arith.constant 0 : index
    %40 = vector.load %arg5[%c0_15, %c0_16, %c0_17, %c0_18] : memref<1x8x4x256xf32, #tpu.memory_space<vmem>>, vector<1x8x4x256xf32>
    %41 = vector.shape_cast %40 : vector<1x8x4x256xf32> to vector<8x4x256xf32>
    %42 = vector.shape_cast %39 : vector<8x4x256xf32> to vector<1x8x4x256xf32>
    tpu.vector_store %arg5[%c0_15, %c0_16, %c0_17, %c0_18], %42 {strides = array<i32>} : memref<1x8x4x256xf32, #tpu.memory_space<vmem>>, vector<1x8x4x256xf32>,
    return
  }
  func.func @transform_0(%arg0: i32, %arg1: i32) -> (i32, i32, i32, i32) {
    %c0_i32 = arith.constant 0 : i32
    %c0_i32_0 = arith.constant 0 : i32
    %c0_i32_1 = arith.constant 0 : i32
    return %arg0, %arg1, %c0_i32, %c0_i32_0 : i32, i32, i32, i32
  }
  func.func @transform_1(%arg0: i32, %arg1: i32) -> (i32, i32) {
    %c0_i32 = arith.constant 0 : i32
    %c0_i32_0 = arith.constant 0 : i32
    %c0_i32_1 = arith.constant 0 : i32
    return %c0_i32, %c0_i32_0 : i32, i32
  }
  func.func @transform_2(%arg0: i32, %arg1: i32) -> (i32, i32) {
    %c0_i32 = arith.constant 0 : i32
    %c0_i32_0 = arith.constant 0 : i32
    %c0_i32_1 = arith.constant 0 : i32
    return %c0_i32, %c0_i32_0 : i32, i32
  }
  func.func @transform_3(%arg0: i32, %arg1: i32) -> (i32, i32, i32, i32) {
    %c0_i32 = arith.constant 0 : i32
    %c0_i32_0 = arith.constant 0 : i32
    %c0_i32_1 = arith.constant 0 : i32
    return %arg0, %arg1, %c0_i32, %c0_i32_0 : i32, i32, i32, i32
  }
}

</mosaic_0001>

<llo_original>
// kernel: tpu_custom_call.1
$region0: #{tpu_custom_call.1}
  #allocation0 [shape = 'u32[]', space=smem, size = 0x4, offset = 0x4, fixed_abs, tag = 'smem constant byte address 0x4 - core index']
  #allocation1 [shape = 'u32[144,128]{1,0:T(1,128)}', space=vmem, size = 0x12000, scoped, tag = 'internal scratch']
  %s0 = inlined_call_operand.hbm [shape: f32[2,8,4,256], index: 0, kind: input, shape index: {}]
  %s1 = inlined_call_operand.vmem [shape: f32[8,1], index: 1, kind: input, shape index: {}]
  %s2 = inlined_call_operand.vmem [shape: f32[8,1], index: 2, kind: input, shape index: {}]
  %s3 = inlined_call_operand.hbm [shape: f32[2,8,4,256], index: 3, kind: output, shape index: {}]
  %s4 = sld [smem:[#allocation0]]
  $region49: #{tpu_custom_call.1} parent=0
    _
  %s6 = ssub.s32 1, %s4
  %s7 = scalar_select 0, %s6, %s4
  $region1: #{tpu_custom_call.1} parent=0
    #allocation2 [shape = 'u8[65536]{0}', space=vmem, size = 0x10000, scoped, tag = 'input window, operand 0']
    #allocation3 [shape = 's32[2]{0}', space=sflag, size = 0x8, scoped, tag = 'scoped memory for tpu_custom_call.1']
    #allocation4 [shape = 's32[2]{0}', space=sflag, size = 0x8, scoped, tag = 'scoped memory for tpu_custom_call.1']
    #allocation5 [shape = 'u8[65536]{0}', space=vmem, size = 0x10000, scoped, tag = 'output window, operand 0']
    %8 = vsyncpa [#allocation3], 0
    %s9 = scalar_lea.sflag [#allocation3], 1
    %10 = vsyncpa %s9, 0
    %11 = vsyncpa [#allocation4], 0
    %s12 = scalar_lea.sflag [#allocation4], 1
    %13 = vsyncpa %s12, 0
    loop: start=0, step=1, limit=4
    $region2: #{tpu_custom_call.1} parent=1 // loop_pre_header
      _
    $region3: #{tpu_custom_call.1} parent=1 // loop_header
      %s15 = sphi 0, %s19
      %p16 = scmp.ge.s32.totalorder %s15, 4
      %s22 = sphi 0, %s34
      %s23 = sphi 0, %s30
      %s24 = sphi 0, %s22
      %s25 = sphi 0, %s23
      %s26 = sphi 0, %s24
      %s27 = sphi 0, %s25
      %s39 = sphi 0, %s41
      %s42 = sphi 0, %s39
      %s43 = sphi 0, %s42
      %s59 = sphi 0, %s43
      %s63 = sphi 0, %s63
      %s65 = sphi 0, %s63
      %s66 = sphi 0, %s65
      %s80 = sphi 0, %s66
      %s84 = sphi 0, %s84
      %s86 = sphi 0, %s84
      %s87 = sphi 0, %s86
      %s101 = sphi 0, %s87
      %s109 = sphi 0, %s111
      %s112 = sphi 0, %s109
      %s113 = sphi 0, %s112
      %s129 = sphi 0, %s113
    $region4: #{tpu_custom_call.1} parent=1 // loop_header_branch
      %18 = sbr.rel (%p16) target = $region8
    $region5: #{tpu_custom_call.1} parent=1 // loop_body
      %s20 = ssub.s32 %s15, 1
      %s21 = ssub.s32 %s15, 2
      %s28 = sadd.s32 1, %s23
      %p29 = scmp.ge.s32.totalorder %s28, 1
      %s30 = scalar_select %p29, 0, %s28
      %s31 = sadd.s32 1, %s22
      %s32 = scalar_select %p29, %s31, %s22
      %p33 = scmp.ge.s32.totalorder %s32, 2
      %s34 = scalar_select %p33, 0, %s32
      %s35 = ssub.s32 %s22, %s34
      %s36 = ssub.s32 %s23, %s30
      %s37 = sor.u32 %s35, %s36
      %p38 = scmp.eq.s32.totalorder %s37, 0
      %s40 = sadd.s32 %s39, 1
      %s41 = scalar_select %p38, %s39, %s40
      %p44 = pneg %p38
      %p45 = scmp.eq.s32.totalorder %s15, 1
      %p46 = por %p44, %p45
      %p47 = scmp.ne.s32.totalorder %s39, %s42
      %p48 = scmp.eq.s32.totalorder %s15, 0
      %p49 = por %p47, %p48
      %p50 = scmp.ne.s32.totalorder %s39, %s42
      %p51 = scmp.eq.s32.totalorder %s20, 1
      %p52 = por %p50, %p51
      %p53 = scmp.ne.s32.totalorder %s42, %s43
      %p54 = scmp.eq.s32.totalorder %s20, 0
      %p55 = por %p53, %p54
      %p56 = scmp.ne.s32.totalorder %s42, %s43
      %p57 = scmp.eq.s32.totalorder %s21, 1
      %p58 = por %p56, %p57
      %p60 = scmp.ne.s32.totalorder %s43, %s59
      %p61 = scmp.eq.s32.totalorder %s21, 0
      %p62 = por %p60, %p61
      %s64 = sadd.s32 %s63, 1
      %p67 = scmp.eq.s32.totalorder %s15, 1
      %p68 = scmp.ne.s32.totalorder %s63, %s65
      %p69 = scmp.eq.s32.totalorder %s15, 0
      %p70 = por %p68, %p69
      %p71 = scmp.ne.s32.totalorder %s63, %s65
      %p72 = scmp.eq.s32.totalorder %s20, 1
      %p73 = por %p71, %p72
      %p74 = scmp.ne.s32.totalorder %s65, %s66
      %p75 = scmp.eq.s32.totalorder %s20, 0
      %p76 = por %p74, %p75
      %p77 = scmp.ne.s32.totalorder %s65, %s66
      %p78 = scmp.eq.s32.totalorder %s21, 1
      %p79 = por %p77, %p78
      %p81 = scmp.ne.s32.totalorder %s66, %s80
      %p82 = scmp.eq.s32.totalorder %s21, 0
      %p83 = por %p81, %p82
      %s85 = sadd.s32 %s84, 1
      %p88 = scmp.eq.s32.totalorder %s15, 1
      %p89 = scmp.ne.s32.totalorder %s84, %s86
      %p90 = scmp.eq.s32.totalorder %s15, 0
      %p91 = por %p89, %p90
      %p92 = scmp.ne.s32.totalorder %s84, %s86
      %p93 = scmp.eq.s32.totalorder %s20, 1
      %p94 = por %p92, %p93
      %p95 = scmp.ne.s32.totalorder %s86, %s87
      %p96 = scmp.eq.s32.totalorder %s20, 0
      %p97 = por %p95, %p96
      %p98 = scmp.ne.s32.totalorder %s86, %s87
      %p99 = scmp.eq.s32.totalorder %s21, 1
      %p100 = por %p98, %p99
      %p102 = scmp.ne.s32.totalorder %s87, %s101
      %p103 = scmp.eq.s32.totalorder %s21, 0
      %p104 = por %p102, %p103
      %s105 = ssub.s32 %s22, %s34
      %s106 = ssub.s32 %s23, %s30
      %s107 = sor.u32 %s105, %s106
      %p108 = scmp.eq.s32.totalorder %s107, 0
      %s110 = sadd.s32 %s109, 1
      %s111 = scalar_select %p108, %s109, %s110
      %p114 = pneg %p108
      %p115 = scmp.eq.s32.totalorder %s15, 1
      %p116 = por %p114, %p115
      %p117 = scmp.ne.s32.totalorder %s109, %s112
      %p118 = scmp.eq.s32.totalorder %s15, 0
      %p119 = por %p117, %p118
      %p120 = scmp.ne.s32.totalorder %s109, %s112
      %p121 = scmp.eq.s32.totalorder %s20, 1
      %p122 = por %p120, %p121
      %p123 = scmp.ne.s32.totalorder %s112, %s113
      %p124 = scmp.eq.s32.totalorder %s20, 0
      %p125 = por %p123, %p124
      %p126 = scmp.ne.s32.totalorder %s112, %s113
      %p127 = scmp.eq.s32.totalorder %s21, 1
      %p128 = por %p126, %p127
      %p130 = scmp.ne.s32.totalorder %s113, %s129
      %p131 = scmp.eq.s32.totalorder %s21, 0
      %p132 = por %p130, %p131
      %p133 = scmp.le.s32.totalorder 1, %s15
      %p134 = scmp.lt.s32.totalorder %s15, 3
      %p135 = pnand %p133, %p134
      %p136 = pneg %p135
      // Predicated region
      $region9: #{tpu_custom_call.1} parent=5 // pred_check
        _
      $region10: #{tpu_custom_call.1} parent=5 // pred_check_branch
        %138 = sbr.rel (%p135) target = $region12
      $region11: #{tpu_custom_call.1} parent=5 // pred_region
        %s139 = ssub.s32 %s15, 1
        // Predicated region
        $region13: #{tpu_custom_call.1} parent=11 // pred_check
          %p140 = pneg %p76
        $region14: #{tpu_custom_call.1} parent=11 // pred_check_branch
          %142 = sbr.rel (%p140) target = $region16
        $region15: #{tpu_custom_call.1} parent=11 // pred_region
          _
        $region16: #{tpu_custom_call.1} parent=11 // pred_fallthru
          _
        // Predicated region
        $region17: #{tpu_custom_call.1} parent=11 // pred_check
          %p143 = pneg %p97
        $region18: #{tpu_custom_call.1} parent=11 // pred_check_branch
          %145 = sbr.rel (%p143) target = $region20
        $region19: #{tpu_custom_call.1} parent=11 // pred_region
          _
        $region20: #{tpu_custom_call.1} parent=11 // pred_fallthru
          _
      $region12: #{tpu_custom_call.1} parent=5 // pred_fallthru
        _
      %p146 = scmp.lt.s32.totalorder %s15, 2
      // Predicated region
      $region21: #{tpu_custom_call.1} parent=5 // pred_check
        %p147 = pneg %p146
      $region22: #{tpu_custom_call.1} parent=5 // pred_check_branch
        %149 = sbr.rel (%p147) target = $region24
      $region23: #{tpu_custom_call.1} parent=5 // pred_region
        // Predicated region
        $region25: #{tpu_custom_call.1} parent=23 // pred_check
          %p150 = pneg %p49
        $region26: #{tpu_custom_call.1} parent=23 // pred_check_branch
          %152 = sbr.rel (%p150) target = $region28
        $region27: #{tpu_custom_call.1} parent=23 // pred_region
          %s153 = sand.u32 %s39, 1
          %s154 = scalar_lea.sflag [#allocation3], %s153
          %s155 = sand.u32 %s39, 1
          %s156 = smul.addr %s155, 64
          %s157 = scalar_lea.vmem [#allocation2], %s156
          %s158 = smul.u32 8, %s23
          %s160 = ssub.s32 1024, 1024
          %161 = vsyncadd %s154, %s160
          %s162 = smul.addr %s158, 2
          %s163 = smul.addr %s22, 16
          %s164 = sadd.s32 %s162, %s163
          %s165 = smul.addr %s164, 64
          %s166 = scalar_lea.hbm %s0, %s165
          %s167 = sshll.u32 %s157, 4
          %s168 = int_to_ptr.vmem [resolvable:$true] %s167
          %173 = dma.hbm_to_vmem [thread:$0]  %s166, 1024, %s168, %s154, 128, 128, 8
        $region28: #{tpu_custom_call.1} parent=23 // pred_fallthru
          _
      $region24: #{tpu_custom_call.1} parent=5 // pred_fallthru
        _
      %p174 = scmp.le.s32.totalorder 1, %s15
      %p175 = scmp.lt.s32.totalorder %s15, 3
      %p176 = pnand %p174, %p175
      %p177 = pneg %p176
      // Predicated region
      $region29: #{tpu_custom_call.1} parent=5 // pred_check
        _
      $region30: #{tpu_custom_call.1} parent=5 // pred_check_branch
        %179 = sbr.rel (%p176) target = $region32
      $region31: #{tpu_custom_call.1} parent=5 // pred_region
        %s180 = ssub.s32 %s15, 1
        %s181 = sand.u32 %s42, 1
        %s182 = scalar_lea.sflag [#allocation3], %s181
        %s183 = sand.u32 %s42, 1
        %s184 = smul.addr %s183, 64
        %s185 = scalar_lea.vmem [#allocation2], %s184
        // Predicated region
        $region33: #{tpu_custom_call.1} parent=31 // pred_check
          %p186 = pneg %p55
        $region34: #{tpu_custom_call.1} parent=31 // pred_check_branch
          %188 = sbr.rel (%p186) target = $region36
        $region35: #{tpu_custom_call.1} parent=31 // pred_region
          %189 = dma.done %s182, 1024
        $region36: #{tpu_custom_call.1} parent=31 // pred_fallthru
          _
        %s190 = sand.u32 %s42, 1
        %s191 = scalar_lea.sflag [#allocation3], %s190
        %s192 = sand.u32 %s42, 1
        %s193 = smul.addr %s192, 64
        %s194 = scalar_lea.vmem [#allocation2], %s193
        %p195 = pneg %p55
        %p196 = pneg %p52
        %p197 = pneg %p76
        %p198 = pneg %p73
        %p199 = pneg %p97
        %p200 = pneg %p94
        %p201 = pneg %p125
        %p202 = pneg %p122
        %s203 = sand.u32 %s112, 1
        %s204 = scalar_lea.sflag [#allocation4], %s203
        %s205 = sand.u32 %s112, 1
        %s206 = smul.addr %s205, 64
        %s207 = scalar_lea.vmem [#allocation5], %s206
        %s208 = smul.u32 8, %s25
        %s209 = smul.u32 8, %s25
        %v210 = vld [vmem:[%s185] sm:$0xff]
        %v211 = vld [vmem:[%s185 + $0x8] sm:$0xff]
        %v212 = vld [vmem:[%s185 + $0x10] sm:$0xff]
        %v213 = vld [vmem:[%s185 + $0x18] sm:$0xff]
        %v214 = vld [vmem:[%s185 + $0x20] sm:$0xff]
        %v215 = vld [vmem:[%s185 + $0x28] sm:$0xff]
        %v216 = vld [vmem:[%s185 + $0x30] sm:$0xff]
        %v217 = vld [vmem:[%s185 + $0x38] sm:$0xff]
        %v226 = vcombine.high %v210, %v210
        %v227 = vcombine.high %v211, %v211
        %v228 = vcombine.high %v212, %v212
        %v229 = vcombine.high %v213, %v213
        %v230 = vcombine.high %v214, %v214
        %v231 = vcombine.high %v215, %v215
        %v232 = vcombine.high %v216, %v216
        %v233 = vcombine.high %v217, %v217
        %vm242 = vcmask 1043456
        %v243 = vsel %vm242, %v210, 0.0
        %v244 = vsel %vm242, %v226, 0.0
        %v245 = vadd.f32 %v243, %v244
        %246 = vadd.xlane.f32.xlu0 %v245
        %v247 = vpop.xlane.xlu0 %246
        %v248 = vsel %vm242, %v211, 0.0
        %v249 = vsel %vm242, %v227, 0.0
        %v250 = vadd.f32 %v248, %v249
        %251 = vadd.xlane.f32.xlu0 %v250
        %v252 = vpop.xlane.xlu0 %251
        %v253 = vsel %vm242, %v212, 0.0
        %v254 = vsel %vm242, %v228, 0.0
        %v255 = vadd.f32 %v253, %v254
        %256 = vadd.xlane.f32.xlu0 %v255
        %v257 = vpop.xlane.xlu0 %256
        %v258 = vsel %vm242, %v213, 0.0
        %v259 = vsel %vm242, %v229, 0.0
        %v260 = vadd.f32 %v258, %v259
        %261 = vadd.xlane.f32.xlu0 %v260
        %v262 = vpop.xlane.xlu0 %261
        %v263 = vsel %vm242, %v214, 0.0
        %v264 = vsel %vm242, %v230, 0.0
        %v265 = vadd.f32 %v263, %v264
        %266 = vadd.xlane.f32.xlu0 %v265
        %v267 = vpop.xlane.xlu0 %266
        %v268 = vsel %vm242, %v215, 0.0
        %v269 = vsel %vm242, %v231, 0.0
        %v270 = vadd.f32 %v268, %v269
        %271 = vadd.xlane.f32.xlu0 %v270
        %v272 = vpop.xlane.xlu0 %271
        %v273 = vsel %vm242, %v216, 0.0
        %v274 = vsel %vm242, %v232, 0.0
        %v275 = vadd.f32 %v273, %v274
        %276 = vadd.xlane.f32.xlu0 %v275
        %v277 = vpop.xlane.xlu0 %276
        %v278 = vsel %vm242, %v217, 0.0
        %v279 = vsel %vm242, %v233, 0.0
        %v280 = vadd.f32 %v278, %v279
        %281 = vadd.xlane.f32.xlu0 %v280
        %v282 = vpop.xlane.xlu0 %281
        %v283 = vmul.f32 %v247, 0.00390625
        %v284 = vmul.f32 %v252, 0.00390625
        %v285 = vmul.f32 %v257, 0.00390625
        %v286 = vmul.f32 %v262, 0.00390625
        %v287 = vmul.f32 %v267, 0.00390625
        %v288 = vmul.f32 %v272, 0.00390625
        %v289 = vmul.f32 %v277, 0.00390625
        %v290 = vmul.f32 %v282, 0.00390625
        %v300 = vunpack.c.l.s4 839922192
        %v301 = vunpack.c.0.s8 %v300
        %v302 = vlaneseq
        %v303 = vshrl.u32 %v302, 7
        %v304 = vsub.s32 %v301, %v303
        %v305 = vrot.slane %v283, %v304
        %v307 = vunpack.c.l.s4 839922192
        %v308 = vunpack.c.0.s8 %v307
        %v309 = vlaneseq
        %v310 = vshrl.u32 %v309, 7
        %v311 = vsub.s32 %v308, %v310
        %v312 = vrot.slane %v284, %v311
        %v314 = vunpack.c.l.s4 839922192
        %v315 = vunpack.c.0.s8 %v314
        %v316 = vlaneseq
        %v317 = vshrl.u32 %v316, 7
        %v318 = vsub.s32 %v315, %v317
        %v319 = vrot.slane %v285, %v318
        %v321 = vunpack.c.l.s4 839922192
        %v322 = vunpack.c.0.s8 %v321
        %v323 = vlaneseq
        %v324 = vshrl.u32 %v323, 7
        %v325 = vsub.s32 %v322, %v324
        %v326 = vrot.slane %v286, %v325
        %v328 = vunpack.c.l.s4 839922192
        %v329 = vunpack.c.0.s8 %v328
        %v330 = vlaneseq
        %v331 = vshrl.u32 %v330, 7
        %v332 = vsub.s32 %v329, %v331
        %v333 = vrot.slane %v287, %v332
        %v335 = vunpack.c.l.s4 839922192
        %v336 = vunpack.c.0.s8 %v335
        %v337 = vlaneseq
        %v338 = vshrl.u32 %v337, 7
        %v339 = vsub.s32 %v336, %v338
        %v340 = vrot.slane %v288, %v339
        %v342 = vunpack.c.l.s4 839922192
        %v343 = vunpack.c.0.s8 %v342
        %v344 = vlaneseq
        %v345 = vshrl.u32 %v344, 7
        %v346 = vsub.s32 %v343, %v345
        %v347 = vrot.slane %v289, %v346
        %v349 = vunpack.c.l.s4 839922192
        %v350 = vunpack.c.0.s8 %v349
        %v351 = vlaneseq
        %v352 = vshrl.u32 %v351, 7
        %v353 = vsub.s32 %v350, %v352
        %v354 = vrot.slane %v290, %v353
        %v363 = vmul.f32 %v210, %v305
        %v364 = vmul.f32 %v211, %v312
        %v365 = vmul.f32 %v212, %v319
        %v366 = vmul.f32 %v213, %v326
        %v367 = vmul.f32 %v214, %v333
        %v368 = vmul.f32 %v215, %v340
        %v369 = vmul.f32 %v216, %v347
        %v370 = vmul.f32 %v217, %v354
        %v379 = vcombine.high %v363, %v363
        %v380 = vcombine.high %v364, %v364
        %v381 = vcombine.high %v365, %v365
        %v382 = vcombine.high %v366, %v366
        %v383 = vcombine.high %v367, %v367
        %v384 = vcombine.high %v368, %v368
        %v385 = vcombine.high %v369, %v369
        %v386 = vcombine.high %v370, %v370
        %v395 = vsel %vm242, %v363, 0.0
        %v396 = vrot.slane %v395, 4
        %v397 = vadd.f32 %v395, %v396
        %v398 = vrot.slane %v397, 2
        %v399 = vadd.f32 %v397, %v398
        %v400 = vrot.slane %v399, 1
        %v401 = vadd.f32 %v399, %v400
        %v402 = vsel %vm242, %v379, 0.0
        %v403 = vrot.slane %v402, 4
        %v404 = vadd.f32 %v402, %v403
        %v405 = vrot.slane %v404, 2
        %v406 = vadd.f32 %v404, %v405
        %v407 = vrot.slane %v406, 1
        %v408 = vadd.f32 %v406, %v407
        %v409 = vsel %vm242, %v364, 0.0
        %v410 = vrot.slane %v409, 4
        %v411 = vadd.f32 %v409, %v410
        %v412 = vrot.slane %v411, 2
        %v413 = vadd.f32 %v411, %v412
        %v414 = vrot.slane %v413, 1
        %v415 = vadd.f32 %v413, %v414
        %v416 = vsel %vm242, %v380, 0.0
        %v417 = vrot.slane %v416, 4
        %v418 = vadd.f32 %v416, %v417
        %v419 = vrot.slane %v418, 2
        %v420 = vadd.f32 %v418, %v419
        %v421 = vrot.slane %v420, 1
        %v422 = vadd.f32 %v420, %v421
        %v423 = vsel %vm242, %v365, 0.0
        %v424 = vrot.slane %v423, 4
        %v425 = vadd.f32 %v423, %v424
        %v426 = vrot.slane %v425, 2
        %v427 = vadd.f32 %v425, %v426
        %v428 = vrot.slane %v427, 1
        %v429 = vadd.f32 %v427, %v428
        %v430 = vsel %vm242, %v381, 0.0
        %v431 = vrot.slane %v430, 4
        %v432 = vadd.f32 %v430, %v431
        %v433 = vrot.slane %v432, 2
        %v434 = vadd.f32 %v432, %v433
        %v435 = vrot.slane %v434, 1
        %v436 = vadd.f32 %v434, %v435
        %v437 = vsel %vm242, %v366, 0.0
        %v438 = vrot.slane %v437, 4
        %v439 = vadd.f32 %v437, %v438
        %v440 = vrot.slane %v439, 2
        %v441 = vadd.f32 %v439, %v440
        %v442 = vrot.slane %v441, 1
        %v443 = vadd.f32 %v441, %v442
        %v444 = vsel %vm242, %v382, 0.0
        %v445 = vrot.slane %v444, 4
        %v446 = vadd.f32 %v444, %v445
        %v447 = vrot.slane %v446, 2
        %v448 = vadd.f32 %v446, %v447
        %v449 = vrot.slane %v448, 1
        %v450 = vadd.f32 %v448, %v449
        %v451 = vsel %vm242, %v367, 0.0
        %v452 = vrot.slane %v451, 4
        %v453 = vadd.f32 %v451, %v452
        %v454 = vrot.slane %v453, 2
        %v455 = vadd.f32 %v453, %v454
        %v456 = vrot.slane %v455, 1
        %v457 = vadd.f32 %v455, %v456
        %v458 = vsel %vm242, %v383, 0.0
        %v459 = vrot.slane %v458, 4
        %v460 = vadd.f32 %v458, %v459
        %v461 = vrot.slane %v460, 2
        %v462 = vadd.f32 %v460, %v461
        %v463 = vrot.slane %v462, 1
        %v464 = vadd.f32 %v462, %v463
        %v465 = vsel %vm242, %v368, 0.0
        %v466 = vrot.slane %v465, 4
        %v467 = vadd.f32 %v465, %v466
        %v468 = vrot.slane %v467, 2
        %v469 = vadd.f32 %v467, %v468
        %v470 = vrot.slane %v469, 1
        %v471 = vadd.f32 %v469, %v470
        %v472 = vsel %vm242, %v384, 0.0
        %v473 = vrot.slane %v472, 4
        %v474 = vadd.f32 %v472, %v473
        %v475 = vrot.slane %v474, 2
        %v476 = vadd.f32 %v474, %v475
        %v477 = vrot.slane %v476, 1
        %v478 = vadd.f32 %v476, %v477
        %v479 = vsel %vm242, %v369, 0.0
        %v480 = vrot.slane %v479, 4
        %v481 = vadd.f32 %v479, %v480
        %v482 = vrot.slane %v481, 2
        %v483 = vadd.f32 %v481, %v482
        %v484 = vrot.slane %v483, 1
        %v485 = vadd.f32 %v483, %v484
        %v486 = vsel %vm242, %v385, 0.0
        %v487 = vrot.slane %v486, 4
        %v488 = vadd.f32 %v486, %v487
        %v489 = vrot.slane %v488, 2
        %v490 = vadd.f32 %v488, %v489
        %v491 = vrot.slane %v490, 1
        %v492 = vadd.f32 %v490, %v491
        %v493 = vsel %vm242, %v370, 0.0
        %v494 = vrot.slane %v493, 4
        %v495 = vadd.f32 %v493, %v494
        %v496 = vrot.slane %v495, 2
        %v497 = vadd.f32 %v495, %v496
        %v498 = vrot.slane %v497, 1
        %v499 = vadd.f32 %v497, %v498
        %v500 = vsel %vm242, %v386, 0.0
        %v501 = vrot.slane %v500, 4
        %v502 = vadd.f32 %v500, %v501
        %v503 = vrot.slane %v502, 2
        %v504 = vadd.f32 %v502, %v503
        %v505 = vrot.slane %v504, 1
        %v506 = vadd.f32 %v504, %v505
        %vm523 = vcmask 1041409
        %v524 = vsel %vm523, %v415, %v401
        %vm525 = vcmask 1042434
        %v526 = vsel %vm525, %v429, %v524
        %vm527 = vcmask 1043459
        %v528 = vsel %vm527, %v443, %v526
        %vm529 = vcmask 1044484
        %v530 = vsel %vm529, %v457, %v528
        %vm531 = vcmask 1045509
        %v532 = vsel %vm531, %v471, %v530
        %vm533 = vcmask 1046534
        %v534 = vsel %vm533, %v485, %v532
        %vm535 = vcmask 1047559
        %v536 = vsel %vm535, %v499, %v534
        %v537 = vsel %vm523, %v422, %v408
        %v538 = vsel %vm525, %v436, %v537
        %v539 = vsel %vm527, %v450, %v538
        %v540 = vsel %vm529, %v464, %v539
        %v541 = vsel %vm531, %v478, %v540
        %v542 = vsel %vm533, %v492, %v541
        %v543 = vsel %vm535, %v506, %v542
        %v546 = vadd.f32 %v536, %v543
        %547 = vadd.xlane.f32.xlu0 %v546
        %v548 = vpop.xlane.xlu0 %547
        %v549 = vmul.f32 %v548, 0.00390625
        %v551 = vrot.slane %v549, 1
        %v552 = vrot.slane %v549, 2
        %v553 = vrot.slane %v549, 3
        %v554 = vrot.slane %v549, 4
        %v555 = vrot.slane %v549, 5
        %v556 = vrot.slane %v549, 6
        %v557 = vrot.slane %v549, 7
        %v566 = vsub.f32 %v401, %v549
        %v567 = vsub.f32 %v408, %v549
        %v568 = vsub.f32 %v415, %v551
        %v569 = vsub.f32 %v422, %v551
        %v570 = vsub.f32 %v429, %v552
        %v571 = vsub.f32 %v436, %v552
        %v572 = vsub.f32 %v443, %v553
        %v573 = vsub.f32 %v450, %v553
        %v574 = vsub.f32 %v457, %v554
        %v575 = vsub.f32 %v464, %v554
        %v576 = vsub.f32 %v471, %v555
        %v577 = vsub.f32 %v478, %v555
        %v578 = vsub.f32 %v485, %v556
        %v579 = vsub.f32 %v492, %v556
        %v580 = vsub.f32 %v499, %v557
        %v581 = vsub.f32 %v506, %v557
        %v582 = vmul.f32 %v566, %v566
        %v583 = vmul.f32 %v567, %v567
        %v584 = vmul.f32 %v568, %v568
        %v585 = vmul.f32 %v569, %v569
        %v586 = vmul.f32 %v570, %v570
        %v587 = vmul.f32 %v571, %v571
        %v588 = vmul.f32 %v572, %v572
        %v589 = vmul.f32 %v573, %v573
        %v590 = vmul.f32 %v574, %v574
        %v591 = vmul.f32 %v575, %v575
        %v592 = vmul.f32 %v576, %v576
        %v593 = vmul.f32 %v577, %v577
        %v594 = vmul.f32 %v578, %v578
        %v595 = vmul.f32 %v579, %v579
        %v596 = vmul.f32 %v580, %v580
        %v597 = vmul.f32 %v581, %v581
        %v614 = vrot.slane %v584, 7
        %v615 = vsel %vm523, %v614, %v582
        %v616 = vrot.slane %v586, 6
        %v617 = vsel %vm525, %v616, %v615
        %v618 = vrot.slane %v588, 5
        %v619 = vsel %vm527, %v618, %v617
        %v620 = vrot.slane %v590, 4
        %v621 = vsel %vm529, %v620, %v619
        %v622 = vrot.slane %v592, 3
        %v623 = vsel %vm531, %v622, %v621
        %v624 = vrot.slane %v594, 2
        %v625 = vsel %vm533, %v624, %v623
        %v626 = vrot.slane %v596, 1
        %v627 = vsel %vm535, %v626, %v625
        %v628 = vrot.slane %v585, 7
        %v629 = vsel %vm523, %v628, %v583
        %v630 = vrot.slane %v587, 6
        %v631 = vsel %vm525, %v630, %v629
        %v632 = vrot.slane %v589, 5
        %v633 = vsel %vm527, %v632, %v631
        %v634 = vrot.slane %v591, 4
        %v635 = vsel %vm529, %v634, %v633
        %v636 = vrot.slane %v593, 3
        %v637 = vsel %vm531, %v636, %v635
        %v638 = vrot.slane %v595, 2
        %v639 = vsel %vm533, %v638, %v637
        %v640 = vrot.slane %v597, 1
        %v641 = vsel %vm535, %v640, %v639
        %v644 = vadd.f32 %v627, %v641
        %645 = vadd.xlane.f32.xlu0 %v644
        %v646 = vpop.xlane.xlu0 %645
        %v647 = vmul.f32 %v646, 0.003921569
        %v648 = vrsqrt.pop %v647
        %v649 = vmul.f32 %v647, %v648
        %vm650 = vcmp.eq.f32.partialorder %v647, inf
        %v651 = vsel %vm650, %v647, %v649
        %vm652 = vcmp.eq.f32.partialorder %v647, 0.0
        %v653 = vand.u32 %v647, 2147483648
        %v654 = vsel %vm652, %v653, %v651
        %v655 = vadd.f32 %v654, 1e-05
        %v656 = vrcp.pop %v655
        %v658 = vrot.slane %v656, 1
        %v659 = vrot.slane %v656, 2
        %v660 = vrot.slane %v656, 3
        %v661 = vrot.slane %v656, 4
        %v662 = vrot.slane %v656, 5
        %v663 = vrot.slane %v656, 6
        %v664 = vrot.slane %v656, 7
        %v673 = vmul.f32 %v566, %v656
        %v674 = vmul.f32 %v567, %v656
        %v675 = vmul.f32 %v568, %v658
        %v676 = vmul.f32 %v569, %v658
        %v677 = vmul.f32 %v570, %v659
        %v678 = vmul.f32 %v571, %v659
        %v679 = vmul.f32 %v572, %v660
        %v680 = vmul.f32 %v573, %v660
        %v681 = vmul.f32 %v574, %v661
        %v682 = vmul.f32 %v575, %v661
        %v683 = vmul.f32 %v576, %v662
        %v684 = vmul.f32 %v577, %v662
        %v685 = vmul.f32 %v578, %v663
        %v686 = vmul.f32 %v579, %v663
        %v687 = vmul.f32 %v580, %v664
        %v688 = vmul.f32 %v581, %v664
        %v689 = vld [vmem:[%s1] sm:$0xff]
        %v690 = vld [vmem:[%s2] sm:$0xff]
        %692 = vset.pattern.permute.xlu0 0
        %693 = vperm.xlu0 %692, %v689
        %v694 = vpop.permute.xlu0 %693
        %v695 = vrot.slane %v694, 1
        %v696 = vrot.slane %v694, 2
        %v697 = vrot.slane %v694, 3
        %v698 = vrot.slane %v694, 4
        %v699 = vrot.slane %v694, 5
        %v700 = vrot.slane %v694, 6
        %v701 = vrot.slane %v694, 7
        %v710 = vmul.f32 %v673, %v694
        %v711 = vmul.f32 %v674, %v694
        %v712 = vmul.f32 %v675, %v695
        %v713 = vmul.f32 %v676, %v695
        %v714 = vmul.f32 %v677, %v696
        %v715 = vmul.f32 %v678, %v696
        %v716 = vmul.f32 %v679, %v697
        %v717 = vmul.f32 %v680, %v697
        %v718 = vmul.f32 %v681, %v698
        %v719 = vmul.f32 %v682, %v698
        %v720 = vmul.f32 %v683, %v699
        %v721 = vmul.f32 %v684, %v699
        %v722 = vmul.f32 %v685, %v700
        %v723 = vmul.f32 %v686, %v700
        %v724 = vmul.f32 %v687, %v701
        %v725 = vmul.f32 %v688, %v701
        %727 = vset.pattern.permute.xlu0 0
        %728 = vperm.xlu0 %727, %v690
        %v729 = vpop.permute.xlu0 %728
        %v730 = vrot.slane %v729, 1
        %v731 = vrot.slane %v729, 2
        %v732 = vrot.slane %v729, 3
        %v733 = vrot.slane %v729, 4
        %v734 = vrot.slane %v729, 5
        %v735 = vrot.slane %v729, 6
        %v736 = vrot.slane %v729, 7
        %v745 = vadd.f32 %v710, %v729
        %v746 = vadd.f32 %v711, %v729
        %v747 = vadd.f32 %v712, %v730
        %v748 = vadd.f32 %v713, %v730
        %v749 = vadd.f32 %v714, %v731
        %v750 = vadd.f32 %v715, %v731
        %v751 = vadd.f32 %v716, %v732
        %v752 = vadd.f32 %v717, %v732
        %v753 = vadd.f32 %v718, %v733
        %v754 = vadd.f32 %v719, %v733
        %v755 = vadd.f32 %v720, %v734
        %v756 = vadd.f32 %v721, %v734
        %v757 = vadd.f32 %v722, %v735
        %v758 = vadd.f32 %v723, %v735
        %v759 = vadd.f32 %v724, %v736
        %v760 = vadd.f32 %v725, %v736
        %v761 = vxor.u32 %v745, 2147483648
        %v762 = vxor.u32 %v746, 2147483648
        %v763 = vxor.u32 %v747, 2147483648
        %v764 = vxor.u32 %v748, 2147483648
        %v765 = vxor.u32 %v749, 2147483648
        %v766 = vxor.u32 %v750, 2147483648
        %v767 = vxor.u32 %v751, 2147483648
        %v768 = vxor.u32 %v752, 2147483648
        %v769 = vxor.u32 %v753, 2147483648
        %v770 = vxor.u32 %v754, 2147483648
        %v771 = vxor.u32 %v755, 2147483648
        %v772 = vxor.u32 %v756, 2147483648
        %v773 = vxor.u32 %v757, 2147483648
        %v774 = vxor.u32 %v758, 2147483648
        %v775 = vxor.u32 %v759, 2147483648
        %v776 = vxor.u32 %v760, 2147483648
        %v777 = vmul.f32 %v761, 1.442695
        %v778 = vpow.pop %v777
        %v779 = vmul.f32 %v762, 1.442695
        %v780 = vpow.pop %v779
        %v781 = vmul.f32 %v763, 1.442695
        %v782 = vpow.pop %v781
        %v783 = vmul.f32 %v764, 1.442695
        %v784 = vpow.pop %v783
        %v785 = vmul.f32 %v765, 1.442695
        %v786 = vpow.pop %v785
        %v787 = vmul.f32 %v766, 1.442695
        %v788 = vpow.pop %v787
        %v789 = vmul.f32 %v767, 1.442695
        %v790 = vpow.pop %v789
        %v791 = vmul.f32 %v768, 1.442695
        %v792 = vpow.pop %v791
        %v793 = vmul.f32 %v769, 1.442695
        %v794 = vpow.pop %v793
        %v795 = vmul.f32 %v770, 1.442695
        %v796 = vpow.pop %v795
        %v797 = vmul.f32 %v771, 1.442695
        %v798 = vpow.pop %v797
        %v799 = vmul.f32 %v772, 1.442695
        %v800 = vpow.pop %v799
        %v801 = vmul.f32 %v773, 1.442695
        %v802 = vpow.pop %v801
        %v803 = vmul.f32 %v774, 1.442695
        %v804 = vpow.pop %v803
        %v805 = vmul.f32 %v775, 1.442695
        %v806 = vpow.pop %v805
        %v807 = vmul.f32 %v776, 1.442695
        %v808 = vpow.pop %v807
        %v809 = vadd.f32 %v778, 1.0
        %v810 = vadd.f32 %v780, 1.0
        %v811 = vadd.f32 %v782, 1.0
        %v812 = vadd.f32 %v784, 1.0
        %v813 = vadd.f32 %v786, 1.0
        %v814 = vadd.f32 %v788, 1.0
        %v815 = vadd.f32 %v790, 1.0
        %v816 = vadd.f32 %v792, 1.0
        %v817 = vadd.f32 %v794, 1.0
        %v818 = vadd.f32 %v796, 1.0
        %v819 = vadd.f32 %v798, 1.0
        %v820 = vadd.f32 %v800, 1.0
        %v821 = vadd.f32 %v802, 1.0
        %v822 = vadd.f32 %v804, 1.0
        %v823 = vadd.f32 %v806, 1.0
        %v824 = vadd.f32 %v808, 1.0
        %v825 = vrcp.pop %v809
        %v826 = vmul.f32 1.0, %v825
        %v827 = vrcp.pop %v810
        %v828 = vmul.f32 1.0, %v827
        %v829 = vrcp.pop %v811
        %v830 = vmul.f32 1.0, %v829
        %v831 = vrcp.pop %v812
        %v832 = vmul.f32 1.0, %v831
        %v833 = vrcp.pop %v813
        %v834 = vmul.f32 1.0, %v833
        %v835 = vrcp.pop %v814
        %v836 = vmul.f32 1.0, %v835
        %v837 = vrcp.pop %v815
        %v838 = vmul.f32 1.0, %v837
        %v839 = vrcp.pop %v816
        %v840 = vmul.f32 1.0, %v839
        %v841 = vrcp.pop %v817
        %v842 = vmul.f32 1.0, %v841
        %v843 = vrcp.pop %v818
        %v844 = vmul.f32 1.0, %v843
        %v845 = vrcp.pop %v819
        %v846 = vmul.f32 1.0, %v845
        %v847 = vrcp.pop %v820
        %v848 = vmul.f32 1.0, %v847
        %v849 = vrcp.pop %v821
        %v850 = vmul.f32 1.0, %v849
        %v851 = vrcp.pop %v822
        %v852 = vmul.f32 1.0, %v851
        %v853 = vrcp.pop %v823
        %v854 = vmul.f32 1.0, %v853
        %v855 = vrcp.pop %v824
        %v856 = vmul.f32 1.0, %v855
        %v857 = vlaneseq
        %v858 = vshrl.u32 %v857, 7
        %v859 = vsub.s32 0, %v858
        %v860 = vrot.slane %v826, %v859
        %v861 = vlaneseq
        %v862 = vshrl.u32 %v861, 7
        %v863 = vsub.s32 0, %v862
        %v864 = vrot.slane %v828, %v863
        %v865 = vlaneseq
        %v866 = vshrl.u32 %v865, 7
        %v867 = vsub.s32 0, %v866
        %v868 = vrot.slane %v830, %v867
        %v869 = vlaneseq
        %v870 = vshrl.u32 %v869, 7
        %v871 = vsub.s32 0, %v870
        %v872 = vrot.slane %v832, %v871
        %v873 = vlaneseq
        %v874 = vshrl.u32 %v873, 7
        %v875 = vsub.s32 0, %v874
        %v876 = vrot.slane %v834, %v875
        %v877 = vlaneseq
        %v878 = vshrl.u32 %v877, 7
        %v879 = vsub.s32 0, %v878
        %v880 = vrot.slane %v836, %v879
        %v881 = vlaneseq
        %v882 = vshrl.u32 %v881, 7
        %v883 = vsub.s32 0, %v882
        %v884 = vrot.slane %v838, %v883
        %v885 = vlaneseq
        %v886 = vshrl.u32 %v885, 7
        %v887 = vsub.s32 0, %v886
        %v888 = vrot.slane %v840, %v887
        %v889 = vlaneseq
        %v890 = vshrl.u32 %v889, 7
        %v891 = vsub.s32 0, %v890
        %v892 = vrot.slane %v842, %v891
        %v893 = vlaneseq
        %v894 = vshrl.u32 %v893, 7
        %v895 = vsub.s32 0, %v894
        %v896 = vrot.slane %v844, %v895
        %v897 = vlaneseq
        %v898 = vshrl.u32 %v897, 7
        %v899 = vsub.s32 0, %v898
        %v900 = vrot.slane %v846, %v899
        %v901 = vlaneseq
        %v902 = vshrl.u32 %v901, 7
        %v903 = vsub.s32 0, %v902
        %v904 = vrot.slane %v848, %v903
        %v905 = vlaneseq
        %v906 = vshrl.u32 %v905, 7
        %v907 = vsub.s32 0, %v906
        %v908 = vrot.slane %v850, %v907
        %v909 = vlaneseq
        %v910 = vshrl.u32 %v909, 7
        %v911 = vsub.s32 0, %v910
        %v912 = vrot.slane %v852, %v911
        %v913 = vlaneseq
        %v914 = vshrl.u32 %v913, 7
        %v915 = vsub.s32 0, %v914
        %v916 = vrot.slane %v854, %v915
        %v917 = vlaneseq
        %v918 = vshrl.u32 %v917, 7
        %v919 = vsub.s32 0, %v918
        %v920 = vrot.slane %v856, %v919
        %v937 = vcombine.low %v860, %v864
        %v938 = vcombine.low %v868, %v872
        %v939 = vcombine.low %v876, %v880
        %v940 = vcombine.low %v884, %v888
        %v941 = vcombine.low %v892, %v896
        %v942 = vcombine.low %v900, %v904
        %v943 = vcombine.low %v908, %v912
        %v944 = vcombine.low %v916, %v920
        %v953 = vmul.f32 %v210, %v937
        %v954 = vmul.f32 %v211, %v938
        %v955 = vmul.f32 %v212, %v939
        %v956 = vmul.f32 %v213, %v940
        %v957 = vmul.f32 %v214, %v941
        %v958 = vmul.f32 %v215, %v942
        %v959 = vmul.f32 %v216, %v943
        %v960 = vmul.f32 %v217, %v944
        %961 = vst [vmem:[%s207] sm:$0xff] %v953
        %962 = vst [vmem:[%s207 + $0x8] sm:$0xff] %v954
        %963 = vst [vmem:[%s207 + $0x10] sm:$0xff] %v955
        %964 = vst [vmem:[%s207 + $0x18] sm:$0xff] %v956
        %965 = vst [vmem:[%s207 + $0x20] sm:$0xff] %v957
        %966 = vst [vmem:[%s207 + $0x28] sm:$0xff] %v958
        %967 = vst [vmem:[%s207 + $0x30] sm:$0xff] %v959
        %968 = vst [vmem:[%s207 + $0x38] sm:$0xff] %v960
        %s969 = sand.u32 %s112, 1
        %s970 = scalar_lea.sflag [#allocation4], %s969
        %s971 = sand.u32 %s112, 1
        %s972 = smul.addr %s971, 64
        %s973 = scalar_lea.vmem [#allocation5], %s972
        // Predicated region
        $region37: #{tpu_custom_call.1} parent=31 // pred_check
          %p974 = pneg %p122
        $region38: #{tpu_custom_call.1} parent=31 // pred_check_branch
          %976 = sbr.rel (%p974) target = $region40
        $region39: #{tpu_custom_call.1} parent=31 // pred_region
          %s977 = smul.u32 8, %s25
          %s979 = ssub.s32 1024, 1024
          %980 = vsyncadd %s970, %s979
          %s981 = smul.addr %s977, 2
          %s982 = smul.addr %s24, 16
          %s983 = sadd.s32 %s981, %s982
          %s984 = smul.addr %s983, 64
          %s985 = scalar_lea.hbm %s3, %s984
          %s986 = sshll.u32 %s973, 4
          %s987 = int_to_ptr.vmem [resolvable:$true] %s986
          %992 = dma.vmem_to_hbm [thread:$0]  %s987, 1024, %s985, %s970, 128, 128, 8
        $region40: #{tpu_custom_call.1} parent=31 // pred_fallthru
          _
      $region32: #{tpu_custom_call.1} parent=5 // pred_fallthru
        _
      %p993 = scmp.le.s32.totalorder 2, %s15
      // Predicated region
      $region41: #{tpu_custom_call.1} parent=5 // pred_check
        %p994 = pneg %p993
      $region42: #{tpu_custom_call.1} parent=5 // pred_check_branch
        %996 = sbr.rel (%p994) target = $region44
      $region43: #{tpu_custom_call.1} parent=5 // pred_region
        %s997 = ssub.s32 %s15, 2
        // Predicated region
        $region45: #{tpu_custom_call.1} parent=43 // pred_check
          %p998 = pneg %p128
        $region46: #{tpu_custom_call.1} parent=43 // pred_check_branch
          %1000 = sbr.rel (%p998) target = $region48
        $region47: #{tpu_custom_call.1} parent=43 // pred_region
          %s1001 = sand.u32 %s113, 1
          %s1002 = scalar_lea.sflag [#allocation4], %s1001
          %s1003 = sand.u32 %s113, 1
          %s1004 = smul.addr %s1003, 64
          %s1005 = scalar_lea.vmem [#allocation5], %s1004
          %1006 = dma.done %s1002, 1024
        $region48: #{tpu_custom_call.1} parent=43 // pred_fallthru
          _
      $region44: #{tpu_custom_call.1} parent=5 // pred_fallthru
        _
    $region6: #{tpu_custom_call.1} parent=1 // loop_footer
      %s19 = sadd.s32 1, %s15
    $region7: #{tpu_custom_call.1} parent=1 // loop_footer_branch
      %14 = sbr.rel target = $region3
    $region8: #{tpu_custom_call.1} parent=1 // loop_exit
      _
    %1007 = vsyncpa [#allocation3], 1
    %s1008 = scalar_lea.sflag [#allocation3], 1
    %1009 = vsyncpa %s1008, 1
    %1010 = vsyncpa [#allocation4], 1
    %s1011 = scalar_lea.sflag [#allocation4], 1
    %1012 = vsyncpa %s1011, 1

</llo_original>
